<compile_context>
chip_gen: v5e
topology: v5e:2x2
jax: 0.10.0
libtpu: 0.0.40
codegen_flags: <defaults>
</compile_context>

<pallas_src>
import functools
import logging
from typing import Dict, Optional, Tuple

import jax
import jax.numpy as jnp
from jax.experimental import pallas as pl
from jax.experimental.pallas import tpu as pltpu

_MIB = 1024 * 1024


# ----------------------------------------------------------------------------
# Hardware / tiling helpers
# ----------------------------------------------------------------------------

def _prod(xs):
    p = 1
    for x in xs:
        p *= int(x)
    return p


def _round_up(x: int, m: int) -> int:
    return ((x + m - 1) // m) * m


def _largest_aligned_divisor(extent: int, unit: int, cap: int) -> int:
    """Largest divisor of `extent` that is a multiple of `unit` and <= cap (0 if none)."""
    cap = min(cap, extent)
    d = cap - (cap % unit)
    while d >= unit:
        if extent % d == 0:
            return d
        d -= unit
    return 0


@functools.lru_cache(maxsize=None)
def _hardware_params_cached():
    """Generation-aware block-byte target, vmem limit and TensorCore count."""
    vmem_cap = None
    kind = ""
    try:
        info = pltpu.get_tpu_info()
        vmem_cap = int(getattr(info, "vmem_capacity_bytes", 0)) or None
    except Exception:
        vmem_cap = None
    try:
        kind = jax.devices()[0].device_kind.lower()
    except Exception:
        kind = ""
    if vmem_cap is None:
        vmem_cap = 64 * _MIB            # conservative fallback (v7x-class)
    if vmem_cap <= 64 * _MIB:
        # v7x-class: 64 MiB physical VMEM per TC, 2 TCs/chip, 3.2 TB/s HBM.
        return {"block_bytes": 4 * _MIB, "vmem_limit": 40 * _MIB, "num_tc": 2}
    # v5e / v6e class: 128 MiB VMEM, single TensorCore.
    num_tc = 2 if ("v4" in kind or "7" in kind) else 1
    return {"block_bytes": 8 * _MIB, "vmem_limit": 64 * _MIB, "num_tc": num_tc}


def _hardware_params():
    return dict(_hardware_params_cached())


def _natural_2d(shape) -> Tuple[int, int]:
    """(prod(leading), H*W) factorisation — lane axis as wide as possible."""
    if len(shape) >= 3:
        return _prod(shape[:-2]), int(shape[-2]) * int(shape[-1])
    if len(shape) == 2:
        return int(shape[0]), int(shape[1])
    return 1, (int(shape[0]) if shape else 1)


def _plan_image_tiling(shape, dtype, hw) -> Dict[str, int]:
    """Pick a free 2-D factorisation, padding, and (tr, tc) block shape."""
    itemsize = jnp.dtype(dtype).itemsize
    sub = {1: 32, 2: 16}.get(itemsize, 8)      # bf16 packs (16,128), f32 (8,128)
    budget = int(hw["block_bytes"])
    multi_tc = hw["num_tc"] >= 2

    rows, cols = _natural_2d(shape)
    total = rows * cols

    # Small slab: one full-dim block (exempt from the (8,128) rule), grid (1,1).
    if total * itemsize <= budget:
        return dict(rows=rows, cols=cols, rows_p=rows, cols_p=cols, tr=rows, tc=cols)

    # Free row-major re-factorisation (pure reshape, zero data movement):
    # trade lane width for rows until rows is sub-unit aligned and, on 2-TC
    # chips, big enough for >=2 parallel row tiles.
    want_rows = sub * (2 if multi_tc else 1)
    while ((rows % sub != 0) or (rows < want_rows)) and (cols % 256 == 0):
        rows *= 2
        cols //= 2

    rows_p = _round_up(rows, sub)
    cols_p = _round_up(cols, 128)

    # Column tile: full width if a sub-unit-tall full-width block fits the
    # budget; else the largest 128-aligned divisor.  Pad the column axis only
    # when the divisor structure would force pathologically narrow tiles.
    if sub * cols_p * itemsize <= budget:
        tc = cols_p
    else:
        cap_lanes = max(128, ((budget // (sub * itemsize)) // 128) * 128)
        tc = _largest_aligned_divisor(cols_p, 128, cap_lanes)
        if tc * 4 < cap_lanes:
            tc = cap_lanes
            cols_p = _round_up(cols_p, tc)

    # Row tile: fill the byte budget; on 2-TC chips cap at rows_p//2 so the
    # 'parallel' row axis always has >=2 tiles to shard across cores.
    row_cap = max(sub, ((budget // (tc * itemsize)) // sub) * sub)
    if multi_tc:
        half = ((rows_p // 2) // sub) * sub
        if half >= sub:
            row_cap = min(row_cap, half)
    tr = _largest_aligned_divisor(rows_p, sub, row_cap)
    if rows_p > row_cap and tr * 8 < row_cap:
        # Poor divisor structure on the row axis: pad instead of collapsing to
        # tiny (per-step-overhead dominated) blocks.
        tr = row_cap
        rows_p = _round_up(rows_p, tr)

    return dict(rows=rows, cols=cols, rows_p=rows_p, cols_p=cols_p, tr=tr, tc=tc)


def _prep_image(a: jnp.ndarray, plan: Dict[str, int]) -> jnp.ndarray:
    """Free reshape to the planned 2-D slab; zero-pad only when required."""
    a2 = a.reshape(plan["rows"], plan["cols"])
    pad_r = plan["rows_p"] - plan["rows"]
    pad_c = plan["cols_p"] - plan["cols"]
    if pad_r or pad_c:
        a2 = jnp.pad(a2, ((0, pad_r), (0, pad_c)))
    return a2


def _msg_2d(m: jnp.ndarray) -> jnp.ndarray:
    return m if m.ndim == 2 else m.reshape(1, -1)


# ----------------------------------------------------------------------------
# Pallas kernel bodies
# ----------------------------------------------------------------------------

def _stable_bce_sum(x, z):
    # max(x,0) - x*z + log1p(exp(-|x|))  (numerically stable BCE-with-logits)
    x = x.astype(jnp.float32)
    z = z.astype(jnp.float32)
    return jnp.sum(jnp.maximum(x, 0.0) - x * z + jnp.log1p(jnp.exp(-jnp.abs(x))))


def _mse_accumulate(x_ref, y_ref, acc_ref):
    # Per-tile: elementwise squared diff (VPU) + full reduce (VALU fold + XLU),
    # accumulated into a single-vreg (8,128) scratch (no big accumulator).
    d = x_ref[...].astype(jnp.float32) - y_ref[...].astype(jnp.float32)
    acc_ref[...] += jnp.sum(d * d)


def _mse_kernel(x_ref, y_ref, mse_ref, acc_ref):
    j = pl.program_id(1)

    @pl.when(j == 0)
    def _init():
        acc_ref[...] = jnp.zeros_like(acc_ref)

    _mse_accumulate(x_ref, y_ref, acc_ref)

    @pl.when(j == pl.num_programs(1) - 1)
    def _finalize():
        mse_ref[...] = acc_ref[...].reshape(mse_ref.shape)


def _fused_mse_bce_kernel(x_ref, y_ref, mx_ref, mz_ref, mse_ref, bce_ref, acc_ref):
    i = pl.program_id(0)
    j = pl.program_id(1)
    last_j = j == pl.num_programs(1) - 1

    @pl.when(j == 0)
    def _init():
        acc_ref[...] = jnp.zeros_like(acc_ref)

    _mse_accumulate(x_ref, y_ref, acc_ref)

    @pl.when(last_j)
    def _finalize():
        mse_ref[...] = acc_ref[...].reshape(mse_ref.shape)
        # Every row tile must write its bce block (it gets DMA'd back), but only
        # row tile 0 carries the value; the rest write zeros so summing the
        # partial output is both cheap and correct.
        bce_ref[...] = jnp.zeros_like(bce_ref)

    @pl.when(jnp.logical_and(last_j, i == 0))
    def _finalize_bce():
        bce_ref[...] = jnp.full(bce_ref.shape,
                                _stable_bce_sum(mx_ref[...], mz_ref[...]),
                                dtype=jnp.float32)


# ----------------------------------------------------------------------------
# pallas_call wrapper
# ----------------------------------------------------------------------------

def _run_image_kernel(img_pred, img_tgt, msg_pair=None, hw: Optional[dict] = None):
    assert img_pred.shape == img_tgt.shape, (img_pred.shape, img_tgt.shape)
    hw = dict(hw) if hw is not None else _hardware_params()

    plan = _plan_image_tiling(img_pred.shape, img_pred.dtype, hw)
    a2 = _prep_image(img_pred, plan)
    b2 = _prep_image(img_tgt, plan)
    tr, tc = plan["tr"], plan["tc"]
    n_rt = plan["rows_p"] // tr
    n_ct = plan["cols_p"] // tc

    img_spec = pl.BlockSpec((tr, tc), lambda i, j: (i, j))
    part_shape = jax.ShapeDtypeStruct((n_rt, 8, 128), jnp.float32)
    part_spec = pl.BlockSpec((1, 8, 128), lambda i, j: (i, 0, 0))

    in_specs = [img_spec, img_spec]
    args = [a2, b2]
    out_shape = [part_shape]
    out_specs = [part_spec]

    if msg_pair is not None:
        mx2 = _msg_2d(msg_pair[0])
        mz2 = _msg_2d(msg_pair[1])
        assert mx2.shape == mz2.shape, (mx2.shape, mz2.shape)
        # Full-block, constant index map -> resident across the whole grid.
        in_specs += [pl.BlockSpec(mx2.shape, lambda i, j: (0, 0)),
                     pl.BlockSpec(mz2.shape, lambda i, j: (0, 0))]
        args += [mx2, mz2]
        out_shape.append(part_shape)
        out_specs.append(part_spec)
        kernel = _fused_mse_bce_kernel
    else:
        kernel = _mse_kernel

    outs = pl.pallas_call(
        kernel,
        out_shape=tuple(out_shape),
        grid_spec=pltpu.PrefetchScalarGridSpec(
            num_scalar_prefetch=0,
            grid=(n_rt, n_ct),
            in_specs=in_specs,
            out_specs=out_specs,
            scratch_shapes=[pltpu.VMEM((8, 128), jnp.float32)],
        ),
        compiler_params=pltpu.CompilerParams(
            dimension_semantics=("parallel", "arbitrary"),
            vmem_limit_bytes=int(hw["vmem_limit"]),
        ),
    )(*args)

    # Divide by the ORIGINAL element count (padding contributed 0 to the sums).
    mse_mean = jnp.sum(outs[0][:, 0, 0]) / jnp.float32(img_pred.size)
    if msg_pair is None:
        return mse_mean
    bce_mean = jnp.sum(outs[1][:, 0, 0]) / jnp.float32(msg_pair[0].size)
    return mse_mean, bce_mean


def mse_loss(pred: jnp.ndarray, target: jnp.ndarray, hw: Optional[dict] = None) -> jnp.ndarray:
    """ImageQualityLoss: tiled Pallas MSE (mean reduction)."""
    return _run_image_kernel(pred, target, hw=hw)


def fused_image_message_loss(stego, cover, logits, messages, hw: Optional[dict] = None):
    """One launch: tiled image MSE + resident message BCE. Returns (mse, bce)."""
    return _run_image_kernel(stego, cover, msg_pair=(logits, messages), hw=hw)


def bce_with_logits_loss(logits: jnp.ndarray, targets: jnp.ndarray) -> jnp.ndarray:
    """MessageLoss: BCE-with-logits (mean).

    Plain jnp on purpose (per perf review): a dedicated pallas_call for a tiny
    (B, L) tensor is dominated by launch/DMA-setup overhead, whereas XLA fuses
    this into the surrounding graph.  When the image loss is also active the
    BCE is folded into the image Pallas kernel instead (fused_image_message_loss).
    """
    assert logits.shape == targets.shape, (logits.shape, targets.shape)
    x = logits.astype(jnp.float32)
    z = targets.astype(jnp.float32)
    return jnp.mean(jnp.maximum(x, 0.0) - x * z + jnp.log1p(jnp.exp(-jnp.abs(x))))


# ----------------------------------------------------------------------------
# ProgressiveLoss (JAX/Pallas version)
# ----------------------------------------------------------------------------

class ProgressiveLoss:
    """Progressive loss that changes during training (Pallas TPU version)."""

    def __init__(self, loss_schedule: Dict[int, Dict[str, float]]):
        self.loss_schedule = loss_schedule
        self.current_weights: Dict[str, float] = {}
        self.loss_names = set()
        for weights in loss_schedule.values():
            self.loss_names.update(weights.keys())
        self._last_config_epoch = None
        # TODO(synk): GeneratorLoss / CapacityLoss / RobustnessLoss are declared
        # in the original ModuleDict but never invoked in forward; omitted.

    def update_weights(self, epoch: int):
        epochs = sorted(self.loss_schedule.keys())
        current_config_epoch = epochs[0] if epochs else 0
        for e in epochs:
            if epoch >= e:
                current_config_epoch = e
            else:
                break
        if current_config_epoch != self._last_config_epoch:
            self.current_weights = dict(self.loss_schedule[current_config_epoch])
            self._last_config_epoch = current_config_epoch
            # Only log on an actual schedule change (hoisted off the per-step path).
            logging.info("Updated loss weights for epoch %d: %s",
                         epoch, self.current_weights)

    def forward(
        self,
        outputs: Dict[str, jnp.ndarray],
        targets: Dict[str, jnp.ndarray],
        epoch: int,
    ) -> Tuple[jnp.ndarray, Dict[str, jnp.ndarray]]:
        self.update_weights(epoch)
        w = self.current_weights
        use_msg = w.get("message", 0.0) > 0
        use_img = w.get("image_quality", 0.0) > 0

        if use_msg:
            assert outputs.get("decoded_messages") is not None, "missing decoded_messages"
            assert targets.get("messages") is not None, "missing messages"
        if use_img:
            assert outputs.get("stego_images") is not None, "missing stego_images"
            assert targets.get("cover_images") is not None, "missing cover_images"

        losses: Dict[str, jnp.ndarray] = {}
        if use_msg and use_img:
            mse, bce = fused_image_message_loss(
                outputs["stego_images"], targets["cover_images"],
                outputs["decoded_messages"], targets["messages"])
            losses["message"] = bce
            losses["image_quality"] = mse
        elif use_img:
            losses["image_quality"] = mse_loss(outputs["stego_images"],
                                               targets["cover_images"])
        elif use_msg:
            losses["message"] = bce_with_logits_loss(outputs["decoded_messages"],
                                                     targets["messages"])

        total_loss = jnp.float32(0.0)
        for name, loss in losses.items():
            weight = w.get(name, 0.0)
            if weight > 0:
                total_loss = total_loss + jnp.float32(weight) * loss

        # loss_dict holds device scalars; no per-step float()/item() host sync.
        loss_dict: Dict[str, jnp.ndarray] = dict(losses)
        loss_dict["total"] = total_loss
        return total_loss, loss_dict

    __call__ = forward


# ----------------------------------------------------------------------------
# Demo / smoke test
# ----------------------------------------------------------------------------

if __name__ == "__main__":
    key = jax.random.PRNGKey(0)
    k1, k2, k3, k4 = jax.random.split(key, 4)

    B, C, H, W = 2, 4, 16, 16   # stego / cover images (NCHW)
    L = 32                      # message length

    decoded_messages = jax.random.normal(k1, (B, L), dtype=jnp.float32)        # logits
    messages = jax.random.bernoulli(k2, 0.5, (B, L)).astype(jnp.float32)       # {0,1}
    cover_images = jax.random.uniform(k3, (B, C, H, W), dtype=jnp.float32)
    stego_images = cover_images + 0.05 * jax.random.normal(
        k4, (B, C, H, W), dtype=jnp.float32)

    outputs = {"decoded_messages": decoded_messages, "stego_images": stego_images}
    tgts = {"messages": messages, "cover_images": cover_images}

    loss_schedule = {
        0: {"message": 1.0, "image_quality": 0.5},
        10: {"message": 0.8, "image_quality": 1.0, "adversarial": 0.1},
    }

    prog_loss = ProgressiveLoss(loss_schedule)
    total, loss_dict = prog_loss(outputs, tgts, epoch=3)
    total = jax.block_until_ready(total)

    # plain-JAX references
    x, z = decoded_messages, messages
    ref_msg = jnp.mean(jnp.maximum(x, 0) - x * z + jnp.log1p(jnp.exp(-jnp.abs(x))))
    ref_img = jnp.mean((stego_images - cover_images) ** 2)
    ref_total = 1.0 * ref_msg + 0.5 * ref_img

    def _close(a, b, tol=1e-4):
        return abs(float(a) - float(b)) <= tol * (1.0 + abs(float(b)))

    assert _close(loss_dict["message"], ref_msg), (float(loss_dict["message"]), float(ref_msg))
    assert _close(loss_dict["image_quality"], ref_img), (float(loss_dict["image_quality"]), float(ref_img))
    assert _close(total, ref_total), (float(total), float(ref_total))

    # single-loss code paths
    img_only = mse_loss(stego_images, cover_images)
    msg_only = bce_with_logits_loss(decoded_messages, messages)
    jax.block_until_ready((img_only, msg_only))
    assert _close(img_only, ref_img), (float(img_only), float(ref_img))
    assert _close(msg_only, ref_msg), (float(msg_only), float(ref_msg))

    # Exercise the tiled (multi-block) code paths by shrinking the block budget:
    #   - 2-TC plan -> free re-factorisation + 2 parallel row tiles, grid (2, 1)
    #   - 1-TC plan -> column tiling with accumulate/finalize, grid (1, 2)
    hw_2tc = {"block_bytes": 4 * 1024, "vmem_limit": 32 * _MIB, "num_tc": 2}
    hw_1tc = {"block_bytes": 4 * 1024, "vmem_limit": 32 * _MIB, "num_tc": 1}
    mse_2tc, bce_2tc = fused_image_message_loss(
        stego_images, cover_images, decoded_messages, messages, hw=hw_2tc)
    mse_1tc = mse_loss(stego_images, cover_images, hw=hw_1tc)
    jax.block_until_ready((mse_2tc, bce_2tc, mse_1tc))
    assert _close(mse_2tc, ref_img), (float(mse_2tc), float(ref_img))
    assert _close(bce_2tc, ref_msg), (float(bce_2tc), float(ref_msg))
    assert _close(mse_1tc, ref_img), (float(mse_1tc), float(ref_img))

    # Misaligned shape -> zero-padding path (pads contribute 0; divide by size)
    ka, kb = jax.random.split(k4)
    odd_a = jax.random.normal(ka, (2, 3, 5, 7), dtype=jnp.float32)
    odd_b = jax.random.normal(kb, (2, 3, 5, 7), dtype=jnp.float32)
    ref_odd = jnp.mean((odd_a - odd_b) ** 2)
    hw_pad = {"block_bytes": 512, "vmem_limit": 32 * _MIB, "num_tc": 1}
    mse_odd = jax.block_until_ready(mse_loss(odd_a, odd_b, hw=hw_pad))
    assert _close(mse_odd, ref_odd), (float(mse_odd), float(ref_odd))

    # bf16 inputs (halves HBM bytes; accumulation stays in f32 inside the kernel)
    stego_bf16 = stego_images.astype(jnp.bfloat16)
    cover_bf16 = cover_images.astype(jnp.bfloat16)
    ref_img_bf16 = jnp.mean((stego_bf16.astype(jnp.float32)
                             - cover_bf16.astype(jnp.float32)) ** 2)
    img_bf16 = jax.block_until_ready(mse_loss(stego_bf16, cover_bf16))
    assert _close(img_bf16, ref_img_bf16, tol=1e-3), (float(img_bf16), float(ref_img_bf16))

    print("KERNEL_OK")
</pallas_src>

<mosaic_0001>
module attributes {stable_mosaic.version = 11 : i64} {
  func.func @_fused_mse_bce_kernel(%arg0: i32, %arg1: i32, %arg2: memref<8x256xf32, #tpu.memory_space<vmem>>, %arg3: memref<8x256xf32, #tpu.memory_space<vmem>>, %arg4: memref<2x32xf32, #tpu.memory_space<vmem>>, %arg5: memref<2x32xf32, #tpu.memory_space<vmem>>, %arg6: memref<1x8x128xf32, #tpu.memory_space<vmem>>, %arg7: memref<1x8x128xf32, #tpu.memory_space<vmem>>, %arg8: memref<8x128xf32, #tpu.memory_space<vmem>>) attributes {dimension_semantics = [#tpu.dimension_semantics<parallel>, #tpu.dimension_semantics<arbitrary>], iteration_bounds = array<i64: 1, 1>, scalar_prefetch = 0 : i64, scratch_operands = 1 : i64, tpu.core_type = #tpu.core_type<tc>, window_params = [{transform_indices = @transform_0, window_bounds = array<i64: 8, 256>}, {transform_indices = @transform_1, window_bounds = array<i64: 8, 256>}, {pipeline_mode = #tpu.pipeline_mode<synchronous>, transform_indices = @transform_2, window_bounds = array<i64: 2, 32>}, {pipeline_mode = #tpu.pipeline_mode<synchronous>, transform_indices = @transform_3, window_bounds = array<i64: 2, 32>}, {transform_indices = @transform_4, window_bounds = array<i64: 1, 8, 128>}, {transform_indices = @transform_5, window_bounds = array<i64: 1, 8, 128>}]} {
    %c0_i32 = arith.constant 0 : i32
    %0 = arith.cmpi eq, %arg1, %c0_i32 : i32
    %c0_i32_0 = arith.constant 0 : i32
    %1 = arith.cmpi eq, %arg1, %c0_i32_0 : i32
    %2 = arith.extui %1 : i1 to i32
    %c0_i32_1 = arith.constant 0 : i32
    %3 = arith.cmpi ne, %2, %c0_i32_1 : i32
    scf.if %3 {
      %cst_12 = arith.constant 0.000000e+00 : f32
      %22 = vector.broadcast %cst_12 : f32 to vector<8x128xf32>
      %c0_13 = arith.constant 0 : index
      %c0_14 = arith.constant 0 : index
      %23 = vector.load %arg8[%c0_13, %c0_14] : memref<8x128xf32, #tpu.memory_space<vmem>>, vector<8x128xf32>
      tpu.vector_store %arg8[%c0_13, %c0_14], %22 {strides = array<i32>} : memref<8x128xf32, #tpu.memory_space<vmem>>, vector<8x128xf32>,
    } else {
    }
    %c0 = arith.constant 0 : index
    %c0_2 = arith.constant 0 : index
    %4 = vector.load %arg2[%c0, %c0_2] : memref<8x256xf32, #tpu.memory_space<vmem>>, vector<8x256xf32>
    %c0_3 = arith.constant 0 : index
    %c0_4 = arith.constant 0 : index
    %5 = vector.load %arg3[%c0_3, %c0_4] : memref<8x256xf32, #tpu.memory_space<vmem>>, vector<8x256xf32>
    %6 = arith.subf %4, %5 : vector<8x256xf32>
    %c0_5 = arith.constant 0 : index
    %c0_6 = arith.constant 0 : index
    %7 = vector.load %arg8[%c0_5, %c0_6] : memref<8x128xf32, #tpu.memory_space<vmem>>, vector<8x128xf32>
    %8 = arith.mulf %6, %6 : vector<8x256xf32>
    %9 = vector.shape_cast %8 : vector<8x256xf32> to vector<1x8x256xf32>
    %cst = arith.constant dense<0.000000e+00> : vector<1xf32>
    %10 = vector.multi_reduction <add>, %9, %cst [1, 2] : vector<1x8x256xf32> to vector<1xf32>
    %11 = vector.shape_cast %10 : vector<1xf32> to vector<1x1x1xf32>
    %12 = vector.extract %11[0, 0, 0] : f32 from vector<1x1x1xf32>
    %13 = vector.broadcast %12 : f32 to vector<8x128xf32>
    %14 = arith.addf %7, %13 : vector<8x128xf32>
    %c0_7 = arith.constant 0 : index
    %c0_8 = arith.constant 0 : index
    %15 = vector.load %arg8[%c0_7, %c0_8] : memref<8x128xf32, #tpu.memory_space<vmem>>, vector<8x128xf32>
    tpu.vector_store %arg8[%c0_7, %c0_8], %14 {strides = array<i32>} : memref<8x128xf32, #tpu.memory_space<vmem>>, vector<8x128xf32>,
    %16 = arith.extui %0 : i1 to i32
    %c0_i32_9 = arith.constant 0 : i32
    %17 = arith.cmpi ne, %16, %c0_i32_9 : i32
    scf.if %17 {
      %c0_12 = arith.constant 0 : index
      %c0_13 = arith.constant 0 : index
      %22 = vector.load %arg8[%c0_12, %c0_13] : memref<8x128xf32, #tpu.memory_space<vmem>>, vector<8x128xf32>
      %23 = vector.shape_cast %22 : vector<8x128xf32> to vector<1x8x128xf32>
      %c0_14 = arith.constant 0 : index
      %c0_15 = arith.constant 0 : index
      %c0_16 = arith.constant 0 : index
      %24 = vector.load %arg6[%c0_14, %c0_15, %c0_16] : memref<1x8x128xf32, #tpu.memory_space<vmem>>, vector<1x8x128xf32>
      tpu.vector_store %arg6[%c0_14, %c0_15, %c0_16], %23 {strides = array<i32>} : memref<1x8x128xf32, #tpu.memory_space<vmem>>, vector<1x8x128xf32>,
      %cst_17 = arith.constant 0.000000e+00 : f32
      %25 = vector.broadcast %cst_17 : f32 to vector<1x8x128xf32>
      %c0_18 = arith.constant 0 : index
      %c0_19 = arith.constant 0 : index
      %c0_20 = arith.constant 0 : index
      %26 = vector.load %arg7[%c0_18, %c0_19, %c0_20] : memref<1x8x128xf32, #tpu.memory_space<vmem>>, vector<1x8x128xf32>
      tpu.vector_store %arg7[%c0_18, %c0_19, %c0_20], %25 {strides = array<i32>} : memref<1x8x128xf32, #tpu.memory_space<vmem>>, vector<1x8x128xf32>,
    } else {
    }
    %c0_i32_10 = arith.constant 0 : i32
    %18 = arith.cmpi eq, %arg0, %c0_i32_10 : i32
    %19 = arith.andi %0, %18 : i1
    %20 = arith.extui %19 : i1 to i32
    %c0_i32_11 = arith.constant 0 : i32
    %21 = arith.cmpi ne, %20, %c0_i32_11 : i32
    scf.if %21 {
      %c0_12 = arith.constant 0 : index
      %c0_13 = arith.constant 0 : index
      %22 = vector.load %arg4[%c0_12, %c0_13] : memref<2x32xf32, #tpu.memory_space<vmem>>, vector<2x32xf32>
      %c0_14 = arith.constant 0 : index
      %c0_15 = arith.constant 0 : index
      %23 = vector.load %arg5[%c0_14, %c0_15] : memref<2x32xf32, #tpu.memory_space<vmem>>, vector<2x32xf32>
      %cst_16 = arith.constant 0.000000e+00 : f32
      %24 = vector.broadcast %cst_16 : f32 to vector<2x32xf32>
      %25 = arith.maximumf %22, %24 : vector<2x32xf32>
      %26 = arith.mulf %22, %23 : vector<2x32xf32>
      %27 = arith.subf %25, %26 : vector<2x32xf32>
      %28 = math.absf %22 : vector<2x32xf32>
      %cst_17 = arith.constant 0.000000e+00 : f32
      %29 = vector.broadcast %cst_17 : f32 to vector<2x32xf32>
      %30 = arith.subf %29, %28 : vector<2x32xf32>
      %31 = math.exp %30 : vector<2x32xf32>
      %32 = math.log1p %31 : vector<2x32xf32>
      %33 = arith.addf %27, %32 : vector<2x32xf32>
      %34 = vector.shape_cast %33 : vector<2x32xf32> to vector<1x2x32xf32>
      %cst_18 = arith.constant dense<0.000000e+00> : vector<1xf32>
      %35 = vector.multi_reduction <add>, %34, %cst_18 [1, 2] : vector<1x2x32xf32> to vector<1xf32>
      %36 = vector.shape_cast %35 : vector<1xf32> to vector<1x1x1xf32>
      %37 = vector.extract %36[0, 0, 0] : f32 from vector<1x1x1xf32>
      %38 = vector.broadcast %37 : f32 to vector<1x8x128xf32>
      %c0_19 = arith.constant 0 : index
      %c0_20 = arith.constant 0 : index
      %c0_21 = arith.constant 0 : index
      %39 = vector.load %arg7[%c0_19, %c0_20, %c0_21] : memref<1x8x128xf32, #tpu.memory_space<vmem>>, vector<1x8x128xf32>
      tpu.vector_store %arg7[%c0_19, %c0_20, %c0_21], %38 {strides = array<i32>} : memref<1x8x128xf32, #tpu.memory_space<vmem>>, vector<1x8x128xf32>,
    } else {
    }
    return
  }
  func.func @transform_0(%arg0: i32, %arg1: i32) -> (i32, i32) {
    %c0_i32 = arith.constant 0 : i32
    return %arg0, %arg1 : i32, i32
  }
  func.func @transform_1(%arg0: i32, %arg1: i32) -> (i32, i32) {
    %c0_i32 = arith.constant 0 : i32
    return %arg0, %arg1 : i32, i32
  }
  func.func @transform_2(%arg0: i32, %arg1: i32) -> (i32, i32) {
    %c0_i32 = arith.constant 0 : i32
    %c0_i32_0 = arith.constant 0 : i32
    %c0_i32_1 = arith.constant 0 : i32
    return %c0_i32, %c0_i32_0 : i32, i32
  }
  func.func @transform_3(%arg0: i32, %arg1: i32) -> (i32, i32) {
    %c0_i32 = arith.constant 0 : i32
    %c0_i32_0 = arith.constant 0 : i32
    %c0_i32_1 = arith.constant 0 : i32
    return %c0_i32, %c0_i32_0 : i32, i32
  }
  func.func @transform_4(%arg0: i32, %arg1: i32) -> (i32, i32, i32) {
    %c0_i32 = arith.constant 0 : i32
    %c0_i32_0 = arith.constant 0 : i32
    %c0_i32_1 = arith.constant 0 : i32
    return %arg0, %c0_i32, %c0_i32_0 : i32, i32, i32
  }
  func.func @transform_5(%arg0: i32, %arg1: i32) -> (i32, i32, i32) {
    %c0_i32 = arith.constant 0 : i32
    %c0_i32_0 = arith.constant 0 : i32
    %c0_i32_1 = arith.constant 0 : i32
    return %arg0, %c0_i32, %c0_i32_0 : i32, i32, i32
  }
}

</mosaic_0001>

<llo_original>
// kernel: tpu_custom_call.1
$region0: #{tpu_custom_call.1}
  #allocation0 [shape = 'u32[]', space=smem, size = 0x4, offset = 0x4, fixed_abs, tag = 'smem constant byte address 0x4 - core index']
  #allocation1 [shape = 'u32[72,128]{1,0:T(1,128)}', space=vmem, size = 0x9000, scoped, tag = 'internal scratch']
  #allocation2 [shape = 'f32[8,128]{1,0:T(8,128)}', space=vmem, size = 0x1000, scoped, tag = 'scratch operand']
  %s0 = inlined_call_operand.hbm [shape: f32[8,256], index: 0, kind: input, shape index: {}]
  %s1 = inlined_call_operand.hbm [shape: f32[8,256], index: 1, kind: input, shape index: {}]
  %s2 = inlined_call_operand.hbm [shape: f32[2,32], index: 2, kind: input, shape index: {}]
  %s3 = inlined_call_operand.vmem [shape: f32[2,32], index: 3, kind: input, shape index: {}]
  %s4 = inlined_call_operand.hbm [shape: f32[1,8,128], index: 4, kind: output, shape index: {0}]
  %s5 = inlined_call_operand.hbm [shape: f32[1,8,128], index: 5, kind: output, shape index: {1}]
  %6 = xla_tuple %s4, %s5
  %s7 = sld [smem:[#allocation0]]
  $region58: #{tpu_custom_call.1} parent=0
    _
  %s9 = ssub.s32 1, %s7
  %s10 = scalar_select 0, %s9, %s7
  $region1: #{tpu_custom_call.1} parent=0
    #allocation3 [shape = 'u8[8192]{0}', space=vmem, size = 0x2000, scoped, tag = 'input window, operand 0, single buffered']
    #allocation4 [shape = 's32[1]{0}', space=sflag, size = 0x4, scoped, tag = 'scoped memory for tpu_custom_call.1']
    #allocation5 [shape = 's32[1]{0}', space=sflag, size = 0x4, scoped, tag = 'scoped memory for tpu_custom_call.1']
    #allocation6 [shape = 'u8[8192]{0}', space=vmem, size = 0x2000, scoped, tag = 'input window, operand 1, single buffered']
    #allocation7 [shape = 's32[1]{0}', space=sflag, size = 0x4, scoped, tag = 'scoped memory for tpu_custom_call.1']
    #allocation8 [shape = 'u8[1024]{0}', space=vmem, size = 0x400, scoped, tag = 'input window, operand 2, single buffered']
    #allocation9 [shape = 'u8[4096]{0}', space=vmem, size = 0x1000, scoped, tag = 'output window, operand 0, single buffered']
    #allocation10 [shape = 'u8[4096]{0}', space=vmem, size = 0x1000, scoped, tag = 'output window, operand 1, single buffered']
    #allocation11 [shape = 's32[1]{0}', space=sflag, size = 0x4, scoped, tag = 'scoped memory for tpu_custom_call.1']
    %11 = vsyncpa [#allocation4], 0
    %12 = vsyncpa [#allocation7], 0
    %13 = vsyncpa [#allocation5], 0
    %14 = vsyncpa [#allocation11], 0
    // Predicated region
    $region2: #{tpu_custom_call.1} parent=1 // pred_check
      _
    $region3: #{tpu_custom_call.1} parent=1 // pred_check_branch
      %16 = sbr.rel (0) target = $region5
    $region4: #{tpu_custom_call.1} parent=1 // pred_region
      %18 = vsyncadd [#allocation4], 0
      %s20 = sshll.u32 %s0, 4
      %s21 = int_to_ptr.hbm [resolvable:$true] %s20
      %s22 = sshll.u32 [#allocation3], 4
      %s23 = int_to_ptr.vmem [resolvable:$true] %s22
      %25 = dma.hbm_to_vmem [thread:$0]  %s21, 256, %s23, [#allocation4]
    $region5: #{tpu_custom_call.1} parent=1 // pred_fallthru
      _
    // Predicated region
    $region6: #{tpu_custom_call.1} parent=1 // pred_check
      _
    $region7: #{tpu_custom_call.1} parent=1 // pred_check_branch
      %27 = sbr.rel (0) target = $region9
    $region8: #{tpu_custom_call.1} parent=1 // pred_region
      %29 = vsyncadd [#allocation7], 0
      %s31 = sshll.u32 %s1, 4
      %s32 = int_to_ptr.hbm [resolvable:$true] %s31
      %s33 = sshll.u32 [#allocation6], 4
      %s34 = int_to_ptr.vmem [resolvable:$true] %s33
      %36 = dma.hbm_to_vmem [thread:$0]  %s32, 256, %s34, [#allocation7]
    $region9: #{tpu_custom_call.1} parent=1 // pred_fallthru
      _
    // Predicated region
    $region10: #{tpu_custom_call.1} parent=1 // pred_check
      _
    $region11: #{tpu_custom_call.1} parent=1 // pred_check_branch
      %38 = sbr.rel (0) target = $region13
    $region12: #{tpu_custom_call.1} parent=1 // pred_region
      %40 = vsyncadd [#allocation7], 0
      %s42 = sshll.u32 %s2, 4
      %s43 = int_to_ptr.hbm [resolvable:$true] %s42
      %s44 = sshll.u32 [#allocation8], 4
      %s45 = int_to_ptr.vmem [resolvable:$true] %s44
      %47 = dma.hbm_to_vmem [thread:$0]  %s43, 32, %s45, [#allocation7]
    $region13: #{tpu_custom_call.1} parent=1 // pred_fallthru
      _
    // Predicated region
    $region14: #{tpu_custom_call.1} parent=1 // pred_check
      _
    $region15: #{tpu_custom_call.1} parent=1 // pred_check_branch
      %49 = sbr.rel (0) target = $region17
    $region16: #{tpu_custom_call.1} parent=1 // pred_region
      _
    $region17: #{tpu_custom_call.1} parent=1 // pred_fallthru
      _
    // Predicated region
    $region18: #{tpu_custom_call.1} parent=1 // pred_check
      _
    $region19: #{tpu_custom_call.1} parent=1 // pred_check_branch
      %51 = sbr.rel (0) target = $region21
    $region20: #{tpu_custom_call.1} parent=1 // pred_region
      %53 = dma.done [#allocation4], 256
    $region21: #{tpu_custom_call.1} parent=1 // pred_fallthru
      _
    // Predicated region
    $region22: #{tpu_custom_call.1} parent=1 // pred_check
      _
    $region23: #{tpu_custom_call.1} parent=1 // pred_check_branch
      %55 = sbr.rel (0) target = $region25
    $region24: #{tpu_custom_call.1} parent=1 // pred_region
      %57 = dma.done [#allocation7], 256
    $region25: #{tpu_custom_call.1} parent=1 // pred_fallthru
      _
    // Predicated region
    $region26: #{tpu_custom_call.1} parent=1 // pred_check
      _
    $region27: #{tpu_custom_call.1} parent=1 // pred_check_branch
      %59 = sbr.rel (0) target = $region29
    $region28: #{tpu_custom_call.1} parent=1 // pred_region
      %61 = dma.done [#allocation7], 32
    $region29: #{tpu_custom_call.1} parent=1 // pred_fallthru
      _
    %p62 = scmp.eq.s32.totalorder 0, 0
    // Predicated region
    $region30: #{tpu_custom_call.1} parent=1 // pred_check
      %p63 = pneg %p62
    $region31: #{tpu_custom_call.1} parent=1 // pred_check_branch
      %65 = sbr.rel (%p63) target = $region33
    $region32: #{tpu_custom_call.1} parent=1 // pred_region
      %66 = vst [vmem:[#allocation2] sm:$0xff] 0.0
    $region33: #{tpu_custom_call.1} parent=1 // pred_fallthru
      _
    %v67 = vld [vmem:[#allocation3] sm:$0xff]
    %v68 = vld [vmem:[#allocation3 + $0x8] sm:$0xff]
    %v69 = vld [vmem:[#allocation6] sm:$0xff]
    %v70 = vld [vmem:[#allocation6 + $0x8] sm:$0xff]
    %v71 = vsub.f32 %v67, %v69
    %v72 = vsub.f32 %v68, %v70
    %v73 = vld [vmem:[#allocation2] sm:$0xff]
    %v74 = vmul.f32 %v71, %v71
    %v75 = vmul.f32 %v72, %v72
    %v76 = vadd.f32 %v74, %v75
    %77 = vadd.xlane.f32.xlu0 %v76
    %v78 = vpop.xlane.xlu0 %77
    %v79 = vrot.slane %v78, 4
    %v80 = vadd.f32 %v78, %v79
    %v81 = vrot.slane %v80, 2
    %v82 = vadd.f32 %v80, %v81
    %v83 = vrot.slane %v82, 1
    %v84 = vadd.f32 %v82, %v83
    %s85 = vtos %v84
    %v86 = vstv %s85
    %v87 = vadd.f32 %v73, %v86
    %88 = vst [vmem:[#allocation2] sm:$0xff] %v87
    // Predicated region
    $region34: #{tpu_custom_call.1} parent=1 // pred_check
      %p89 = pneg %p62
    $region35: #{tpu_custom_call.1} parent=1 // pred_check_branch
      %91 = sbr.rel (%p89) target = $region37
    $region36: #{tpu_custom_call.1} parent=1 // pred_region
      %v92 = vld [vmem:[#allocation2] sm:$0xff]
      %93 = vst [vmem:[#allocation9] sm:$0xff] %v92
      %94 = vst [vmem:[#allocation10] sm:$0xff] 0.0
    $region37: #{tpu_custom_call.1} parent=1 // pred_fallthru
      _
    %p95 = scmp.eq.s32.totalorder 0, 0
    %p96 = pnand %p62, %p95
    %p97 = pneg %p96
    // Predicated region
    $region38: #{tpu_custom_call.1} parent=1 // pred_check
      _
    $region39: #{tpu_custom_call.1} parent=1 // pred_check_branch
      %99 = sbr.rel (%p96) target = $region41
    $region40: #{tpu_custom_call.1} parent=1 // pred_region
      %v100 = vld [vmem:[#allocation8] sm:$0x3]
      %v101 = vld [vmem:[%s3] sm:$0x3]
      %v102 = vmax.f32 %v100, 0.0
      %v103 = vmul.f32 %v100, %v101
      %v104 = vsub.f32 %v102, %v103
      %v105 = vand.u32 2147483647, %v100
      %v106 = vsub.f32 0.0, %v105
      %v107 = vmul.f32 %v106, 1.442695
      %v108 = vpow.pop %v107
      %v109 = vadd.f32 %v108, 1.0
      %v110 = vlog2.pop %v109
      %v111 = vmul.f32 %v110, 0.6931472
      %v112 = vmul.f32 -0.5, %v108
      %v113 = vadd.f32 %v112, 1.0
      %v114 = vmul.f32 %v113, %v108
      %v115 = vand.u32 2147483647, %v108
      %vm116 = vcmp.lt.f32.partialorder %v115, 0.0004427343
      %v117 = vsel %vm116, %v114, %v111
      %v118 = vadd.f32 %v104, %v117
      %vm119 = vcmask 254976
      %v120 = vsel %vm119, %v118, 0.0
      %121 = vadd.xlane.f32.xlu0 %v120
      %v122 = vpop.xlane.xlu0 %121
      %v123 = vrot.slane %v122, 4
      %v124 = vadd.f32 %v122, %v123
      %v125 = vrot.slane %v124, 2
      %v126 = vadd.f32 %v124, %v125
      %v127 = vrot.slane %v126, 1
      %v128 = vadd.f32 %v126, %v127
      %s129 = vtos %v128
      %v130 = vstv %s129
      %131 = vst [vmem:[#allocation10] sm:$0xff] %v130
    $region41: #{tpu_custom_call.1} parent=1 // pred_fallthru
      _
    // Predicated region
    $region42: #{tpu_custom_call.1} parent=1 // pred_check
      _
    $region43: #{tpu_custom_call.1} parent=1 // pred_check_branch
      %133 = sbr.rel (0) target = $region45
    $region44: #{tpu_custom_call.1} parent=1 // pred_region
      %135 = vsyncadd [#allocation5], 0
      %s137 = sshll.u32 [#allocation9], 4
      %s138 = int_to_ptr.vmem [resolvable:$true] %s137
      %s139 = sshll.u32 %s4, 4
      %s140 = int_to_ptr.hbm [resolvable:$true] %s139
      %142 = dma.vmem_to_hbm [thread:$0]  %s138, 128, %s140, [#allocation5]
    $region45: #{tpu_custom_call.1} parent=1 // pred_fallthru
      _
    // Predicated region
    $region46: #{tpu_custom_call.1} parent=1 // pred_check
      _
    $region47: #{tpu_custom_call.1} parent=1 // pred_check_branch
      %144 = sbr.rel (0) target = $region49
    $region48: #{tpu_custom_call.1} parent=1 // pred_region
      %146 = vsyncadd [#allocation11], 0
      %s148 = sshll.u32 [#allocation10], 4
      %s149 = int_to_ptr.vmem [resolvable:$true] %s148
      %s150 = sshll.u32 %s5, 4
      %s151 = int_to_ptr.hbm [resolvable:$true] %s150
      %153 = dma.vmem_to_hbm [thread:$0]  %s149, 128, %s151, [#allocation11]
    $region49: #{tpu_custom_call.1} parent=1 // pred_fallthru
      _
    // Predicated region
    $region50: #{tpu_custom_call.1} parent=1 // pred_check
      _
    $region51: #{tpu_custom_call.1} parent=1 // pred_check_branch
      %155 = sbr.rel (0) target = $region53
    $region52: #{tpu_custom_call.1} parent=1 // pred_region
      %157 = dma.done [#allocation5], 128
    $region53: #{tpu_custom_call.1} parent=1 // pred_fallthru
      _
    // Predicated region
    $region54: #{tpu_custom_call.1} parent=1 // pred_check
      _
    $region55: #{tpu_custom_call.1} parent=1 // pred_check_branch
      %159 = sbr.rel (0) target = $region57
    $region56: #{tpu_custom_call.1} parent=1 // pred_region
      %161 = dma.done [#allocation11], 128
    $region57: #{tpu_custom_call.1} parent=1 // pred_fallthru
      _
    %162 = vsyncpa [#allocation4], 1
    %163 = vsyncpa [#allocation7], 1
    %164 = vsyncpa [#allocation5], 1
    %165 = vsyncpa [#allocation11], 1

</llo_original>
